<compile_context>
chip_gen: v6e
topology: v6e:2x2x1
jax: 0.10.0
libtpu: 0.0.40
codegen_flags: <defaults>
</compile_context>

<pallas_src>
import functools
import math

import jax
import jax.numpy as jnp
from jax import lax
from jax.experimental import pallas as pl
from jax.experimental.pallas import tpu as pltpu


def _round_up(x, m):
    return ((x + m - 1) // m) * m


def _nonlinear_kernel(*refs, activation, has_bias, acc_in_out):
    """Computes one (tm, tn) output tile.  grid = (M_blocks, N_blocks, K_blocks)."""
    if has_bias:
        x_ref, w_ref, b_ref = refs[:3]
        rest = refs[3:]
    else:
        x_ref, w_ref = refs[:2]
        b_ref = None
        rest = refs[2:]
    if acc_in_out:
        (o_ref,) = rest
        acc_ref = o_ref                     # f32 output doubles as the accumulator
    else:
        o_ref, acc_ref = rest               # bf16-ish output: separate f32 scratch

    k = pl.program_id(2)

    @pl.when(k == 0)
    def _():
        acc_ref[...] = jnp.zeros_like(acc_ref)

    # x tile (tm, tk) contracted with weight tile (tn, tk)  ->  (tm, tn) on the MXU.
    acc_ref[...] += lax.dot_general(
        x_ref[...], w_ref[...],
        dimension_numbers=(((1,), (1,)), ((), ())),
        preferred_element_type=jnp.float32,
    )

    @pl.when(k == pl.num_programs(2) - 1)
    def _():
        h = acc_ref[...]
        if has_bias:
            h = h + b_ref[...]              # f32 epilogue
        if activation is not None:
            h = activation(h)               # f32 epilogue (EUP for gelu/tanh)
        o_ref[...] = h.astype(o_ref.dtype)


def _tpu_defaults():
    """Generation-aware default tiles + VMEM capacity (conservative fallback)."""
    vmem_cap = 64 * 1024 * 1024             # v7x per-TC size: safe everywhere
    try:
        vmem_cap = int(pltpu.get_tpu_info().vmem_capacity_bytes)
    except Exception:
        pass
    kind = ""
    try:
        kind = jax.devices()[0].device_kind.lower()
    except Exception:
        pass
    is_v7x = ("v7" in kind) or ("7x" in kind)
    if "v6" in kind:
        tm, tn, tk = 1024, 1024, 512        # ridge ~717 FLOP/byte -> 512 FLOP/byte
    elif is_v7x:
        tm, tn, tk = 768, 768, 512          # ridge ~311 FLOP/byte -> 384 FLOP/byte
        vmem_cap = min(vmem_cap, 64 * 1024 * 1024)
    else:                                   # v5e / unknown
        tm, tn, tk = 512, 512, 512          # ridge ~240 FLOP/byte -> 256 FLOP/byte
    return tm, tn, tk, vmem_cap, is_v7x


def nonlinear(x, weight, bias=None, activation=None, *,
              tm=None, tn=None, tk=None,
              out_dtype=None, mxu_dtype=jnp.bfloat16):
    """Pallas equivalent of NonLinear.forward: activation(x @ weight.T + bias).

    x:      (..., input_size)
    weight: (output_size, input_size)  -- PyTorch nn.Linear layout, used as-is
            (no per-call transpose: the kernel contracts the K axis directly).
    bias:   (output_size,) or None
    activation: static elementwise jnp-compatible fn or None
    """
    *lead, K = x.shape
    N, K2 = weight.shape
    assert K == K2, "input_size mismatch"
    B = math.prod(lead) if lead else 1
    x2 = x.reshape(B, K)

    out_dtype = x.dtype if out_dtype is None else out_dtype
    has_bias = bias is not None

    dtm, dtn, dtk, vmem_cap, is_v7x = _tpu_defaults()
    tm = dtm if tm is None else tm
    tn = dtn if tn is None else tn
    tk = dtk if tk is None else tk

    # ---- N: pad tiny output widths to a lane-dense 128 (sliced off afterwards) ----
    Np = N if N >= 128 else 128

    # ---- K: pick a divisor tile or zero-pad so every reduction step is full ----
    if K <= tk:
        tk, Kp = K, K
    elif K % tk == 0:
        Kp = K
    else:
        d = next((c for c in (tk, 512, 384, 256, 128) if c <= tk and K % c == 0), None)
        if d is not None:
            tk, Kp = d, K
        else:
            Kp = _round_up(K, tk)           # zero-pad K: exact for the dot

    # ---- clamp tiles to (padded) extents (block == full dim is always legal) ----
    tm = B if B <= tm else tm
    tn = Np if Np <= tn else tn

    # On v7x, ensure the parallel axes have >= 2 blocks so both TensorCores work.
    if is_v7x and pl.cdiv(B, tm) * pl.cdiv(Np, tn) == 1 and 2 * B * Np * Kp > (1 << 30):
        if tn >= 256:
            tn = max(128, (tn // 2) // 128 * 128)
        elif tm >= 16:
            tm = max(8, (tm // 2) // 8 * 8)

    mxu_bytes = jnp.dtype(mxu_dtype).itemsize
    out_bytes = jnp.dtype(out_dtype).itemsize
    acc_in_out = jnp.dtype(out_dtype) == jnp.dtype(jnp.float32)

    def footprint(tm_, tn_, tk_):
        return (2 * tm_ * tk_ * mxu_bytes            # double-buffered x tiles
                + 2 * tn_ * tk_ * mxu_bytes          # double-buffered weight tiles
                + 2 * tm_ * tn_ * out_bytes          # double-buffered output tiles
                + (0 if acc_in_out else tm_ * tn_ * 4)
                + (2 * tn_ * 4 if has_bias else 0))

    budget = int(0.7 * vmem_cap)
    while footprint(tm, tn, tk) > budget and (tm > 8 or tn > 128):
        if tn > 128 and tn >= tm:
            tn = max(128, (tn // 2) // 128 * 128)
        elif tm > 8:
            tm = max(8, (tm // 2) // 8 * 8)
        else:
            break

    # ---- wrapper-side padding / casts (weight kept (N, K): no transpose pass) ----
    # TODO(synk): store weights in mxu_dtype at init time to avoid the per-call cast.
    xw, w, b = x2, weight, bias
    if Kp > K:
        xw = jnp.pad(xw, ((0, 0), (0, Kp - K)))
        w = jnp.pad(w, ((0, 0), (0, Kp - K)))
    if Np > N:
        w = jnp.pad(w, ((0, Np - N), (0, 0)))
        if has_bias:
            b = jnp.pad(b, ((0, Np - N),))
    xw = xw.astype(mxu_dtype)
    w = w.astype(mxu_dtype)

    inputs = [xw, w]
    in_specs = [
        pl.BlockSpec((tm, tk), lambda i, j, k: (i, k)),   # x tile
        pl.BlockSpec((tn, tk), lambda i, j, k: (j, k)),   # weight tile ((N,K) layout)
        # TODO(synk): if profiling on v5e shows exposed weight DMA at small batch,
        # add pipeline_mode=pl.Buffered(3) on the weight spec.
    ]
    if has_bias:
        inputs.append(b.reshape(1, Np).astype(jnp.float32))
        in_specs.append(pl.BlockSpec((1, tn), lambda i, j, k: (0, j)))

    grid = (pl.cdiv(B, tm), pl.cdiv(Np, tn), pl.cdiv(Kp, tk))
    m_blocks, n_blocks, _ = grid

    scratch = [] if acc_in_out else [pltpu.VMEM((tm, tn), jnp.float32)]

    vmem_limit = int(min(max(32 * 1024 * 1024, 2 * footprint(tm, tn, tk)),
                         int(0.85 * vmem_cap)))

    cost = pl.CostEstimate(
        flops=2 * B * Np * Kp,
        transcendentals=(B * Np) if activation is not None else 0,
        # x is re-read once per N block, W once per M block (tiling re-reads).
        bytes_accessed=(B * Kp * mxu_bytes * n_blocks
                        + Np * Kp * mxu_bytes * m_blocks
                        + B * Np * out_bytes
                        + (Np * 4 if has_bias else 0)),
    )

    kernel = functools.partial(_nonlinear_kernel, activation=activation,
                               has_bias=has_bias, acc_in_out=acc_in_out)

    out = pl.pallas_call(
        kernel,
        out_shape=jax.ShapeDtypeStruct((B, Np), out_dtype),
        grid_spec=pltpu.PrefetchScalarGridSpec(
            num_scalar_prefetch=0,
            grid=grid,
            in_specs=in_specs,
            out_specs=pl.BlockSpec((tm, tn), lambda i, j, k: (i, j)),
            scratch_shapes=scratch,
        ),
        compiler_params=pltpu.CompilerParams(
            dimension_semantics=("parallel", "parallel", "arbitrary"),
            vmem_limit_bytes=vmem_limit,
        ),
        cost_estimate=cost,
    )(*inputs)

    if Np > N:
        out = out[:, :N]
    return out.reshape(*lead, N) if lead else out.reshape(N)


if __name__ == "__main__":
    key = jax.random.PRNGKey(0)
    kx, kw, kb, kx2, kw2, kb2, kx3, kw3, kb3 = jax.random.split(key, 9)

    act = jax.nn.gelu

    def ref_fwd(x, w, b, activation):
        h = jnp.dot(x.astype(jnp.bfloat16), w.T.astype(jnp.bfloat16),
                    preferred_element_type=jnp.float32)
        if b is not None:
            h = h + b
        if activation is not None:
            h = activation(h)
        return h

    # ---- small shapes consistent with NonLinear(input_size, output_size) ----
    batch, input_size, output_size = 8, 32, 64
    bound = 1.0 / (input_size ** 0.5)
    x = jax.random.normal(kx, (batch, input_size), dtype=jnp.float32)
    weight = jax.random.uniform(kw, (output_size, input_size),
                                minval=-bound, maxval=bound, dtype=jnp.float32)
    bias = jax.random.uniform(kb, (output_size,),
                              minval=-bound, maxval=bound, dtype=jnp.float32)

    fn = jax.jit(functools.partial(nonlinear, activation=act))
    out = jax.block_until_ready(fn(x, weight, bias))
    ref = ref_fwd(x, weight, bias, act)
    assert out.shape == (batch, output_size)
    assert jnp.allclose(out, ref.astype(out.dtype), atol=1e-3, rtol=1e-3)

    # bias=None / activation=None path (like bias=False module)
    fn_plain = jax.jit(functools.partial(nonlinear, activation=None))
    out2 = jax.block_until_ready(fn_plain(x, weight, None))
    ref2 = ref_fwd(x, weight, None, None)
    assert jnp.allclose(out2, ref2.astype(out2.dtype), atol=1e-3, rtol=1e-3)

    # ---- multi-tile shape exercising the tiled grid + partial M block ----
    B2, K2, N2 = 200, 256, 384
    bound2 = 1.0 / (K2 ** 0.5)
    x3 = jax.random.normal(kx2, (B2, K2), dtype=jnp.float32)
    w3 = jax.random.uniform(kw2, (N2, K2), minval=-bound2, maxval=bound2,
                            dtype=jnp.float32)
    b3 = jax.random.uniform(kb2, (N2,), minval=-bound2, maxval=bound2,
                            dtype=jnp.float32)
    fn3 = jax.jit(functools.partial(nonlinear, activation=act,
                                    tm=64, tn=128, tk=128))
    out3 = jax.block_until_ready(fn3(x3, w3, b3))
    ref3 = ref_fwd(x3, w3, b3, act)
    assert out3.shape == (B2, N2)
    assert jnp.allclose(out3, ref3.astype(out3.dtype), atol=5e-3, rtol=5e-3)

    # ---- irregular K exercising the zero-pad path + bf16-output (acc scratch) ----
    B4, K4, N4 = 16, 200, 256
    bound4 = 1.0 / (K4 ** 0.5)
    x4 = jax.random.normal(kx3, (B4, K4), dtype=jnp.float32)
    w4 = jax.random.uniform(kw3, (N4, K4), minval=-bound4, maxval=bound4,
                            dtype=jnp.float32)
    b4 = jax.random.uniform(kb3, (N4,), minval=-bound4, maxval=bound4,
                            dtype=jnp.float32)
    fn4 = jax.jit(functools.partial(nonlinear, activation=act,
                                    tk=128, out_dtype=jnp.bfloat16))
    out4 = jax.block_until_ready(fn4(x4, w4, b4))
    ref4 = ref_fwd(x4, w4, b4, act).astype(jnp.bfloat16)
    assert out4.shape == (B4, N4) and out4.dtype == jnp.bfloat16
    assert jnp.allclose(out4.astype(jnp.float32), ref4.astype(jnp.float32),
                        atol=1e-2, rtol=1e-2)

    print("KERNEL_OK")
</pallas_src>

<mosaic_0001>
module attributes {stable_mosaic.version = 11 : i64} {
  func.func @_nonlinear_kernel(%arg0: i32, %arg1: i32, %arg2: i32, %arg3: memref<8x32xbf16, #tpu.memory_space<vmem>>, %arg4: memref<128x32xbf16, #tpu.memory_space<vmem>>, %arg5: memref<1x128xf32, #tpu.memory_space<vmem>>, %arg6: memref<8x128xf32, #tpu.memory_space<vmem>>) attributes {dimension_semantics = [#tpu.dimension_semantics<parallel>, #tpu.dimension_semantics<parallel>, #tpu.dimension_semantics<arbitrary>], iteration_bounds = array<i64: 1, 1, 1>, scalar_prefetch = 0 : i64, scratch_operands = 0 : i64, tpu.core_type = #tpu.core_type<tc>, window_params = [{transform_indices = @transform_0, window_bounds = array<i64: 8, 32>}, {transform_indices = @transform_1, window_bounds = array<i64: 128, 32>}, {transform_indices = @transform_2, window_bounds = array<i64: 1, 128>}, {transform_indices = @transform_3, window_bounds = array<i64: 8, 128>}]} {
    %c0_i32 = arith.constant 0 : i32
    %0 = arith.cmpi eq, %arg2, %c0_i32 : i32
    %1 = arith.extui %0 : i1 to i32
    %c0_i32_0 = arith.constant 0 : i32
    %2 = arith.cmpi ne, %1, %c0_i32_0 : i32
    scf.if %2 {
      %cst_10 = arith.constant 0.000000e+00 : f32
      %12 = vector.broadcast %cst_10 : f32 to vector<8x128xf32>
      %c0_11 = arith.constant 0 : index
      %c0_12 = arith.constant 0 : index
      %13 = vector.load %arg6[%c0_11, %c0_12] : memref<8x128xf32, #tpu.memory_space<vmem>>, vector<8x128xf32>
      tpu.vector_store %arg6[%c0_11, %c0_12], %12 {strides = array<i32>} : memref<8x128xf32, #tpu.memory_space<vmem>>, vector<8x128xf32>,
    } else {
    }
    %c0 = arith.constant 0 : index
    %c0_1 = arith.constant 0 : index
    %3 = vector.load %arg6[%c0, %c0_1] : memref<8x128xf32, #tpu.memory_space<vmem>>, vector<8x128xf32>
    %c0_2 = arith.constant 0 : index
    %c0_3 = arith.constant 0 : index
    %4 = vector.load %arg3[%c0_2, %c0_3] : memref<8x32xbf16, #tpu.memory_space<vmem>>, vector<8x32xbf16>
    %c0_4 = arith.constant 0 : index
    %c0_5 = arith.constant 0 : index
    %5 = vector.load %arg4[%c0_4, %c0_5] : memref<128x32xbf16, #tpu.memory_space<vmem>>, vector<128x32xbf16>
    %cst = arith.constant dense<0.000000e+00> : vector<8x128xf32>
    %6 = tpu.matmul %4, %5, %cst {dimension_numbers = #tpu.dot_dimension_numbers<[1], [1], [0], [0], [0, 0, 1, 0], [], []>} : vector<8x32xbf16>, vector<128x32xbf16>, vector<8x128xf32> -> vector<8x128xf32>
    %7 = arith.addf %3, %6 : vector<8x128xf32>
    %c0_6 = arith.constant 0 : index
    %c0_7 = arith.constant 0 : index
    %8 = vector.load %arg6[%c0_6, %c0_7] : memref<8x128xf32, #tpu.memory_space<vmem>>, vector<8x128xf32>
    tpu.vector_store %arg6[%c0_6, %c0_7], %7 {strides = array<i32>} : memref<8x128xf32, #tpu.memory_space<vmem>>, vector<8x128xf32>,
    %c0_i32_8 = arith.constant 0 : i32
    %9 = arith.cmpi eq, %arg2, %c0_i32_8 : i32
    %10 = arith.extui %9 : i1 to i32
    %c0_i32_9 = arith.constant 0 : i32
    %11 = arith.cmpi ne, %10, %c0_i32_9 : i32
    scf.if %11 {
      %c0_10 = arith.constant 0 : index
      %c0_11 = arith.constant 0 : index
      %12 = vector.load %arg6[%c0_10, %c0_11] : memref<8x128xf32, #tpu.memory_space<vmem>>, vector<8x128xf32>
      %c0_12 = arith.constant 0 : index
      %c0_13 = arith.constant 0 : index
      %13 = vector.load %arg5[%c0_12, %c0_13] : memref<1x128xf32, #tpu.memory_space<vmem>>, vector<1x128xf32>
      %14 = vector.broadcast %13 : vector<1x128xf32> to vector<8x128xf32>
      %15 = arith.addf %12, %14 : vector<8x128xf32>
      %16 = arith.mulf %15, %15 : vector<8x128xf32>
      %17 = arith.mulf %15, %16 : vector<8x128xf32>
      %cst_14 = arith.constant 4.471500e-02 : f32
      %18 = vector.broadcast %cst_14 : f32 to vector<8x128xf32>
      %19 = arith.mulf %18, %17 : vector<8x128xf32>
      %20 = arith.addf %15, %19 : vector<8x128xf32>
      %cst_15 = arith.constant 0.797884583 : f32
      %21 = vector.broadcast %cst_15 : f32 to vector<8x128xf32>
      %22 = arith.mulf %21, %20 : vector<8x128xf32>
      %23 = math.tanh %22 : vector<8x128xf32>
      %cst_16 = arith.constant 1.000000e+00 : f32
      %24 = vector.broadcast %cst_16 : f32 to vector<8x128xf32>
      %25 = arith.addf %24, %23 : vector<8x128xf32>
      %cst_17 = arith.constant 5.000000e-01 : f32
      %26 = vector.broadcast %cst_17 : f32 to vector<8x128xf32>
      %27 = arith.mulf %26, %25 : vector<8x128xf32>
      %28 = arith.mulf %15, %27 : vector<8x128xf32>
      %c0_18 = arith.constant 0 : index
      %c0_19 = arith.constant 0 : index
      %29 = vector.load %arg6[%c0_18, %c0_19] : memref<8x128xf32, #tpu.memory_space<vmem>>, vector<8x128xf32>
      tpu.vector_store %arg6[%c0_18, %c0_19], %28 {strides = array<i32>} : memref<8x128xf32, #tpu.memory_space<vmem>>, vector<8x128xf32>,
    } else {
    }
    return
  }
  func.func @transform_0(%arg0: i32, %arg1: i32, %arg2: i32) -> (i32, i32) {
    %c0_i32 = arith.constant 0 : i32
    return %arg0, %arg2 : i32, i32
  }
  func.func @transform_1(%arg0: i32, %arg1: i32, %arg2: i32) -> (i32, i32) {
    %c0_i32 = arith.constant 0 : i32
    return %arg1, %arg2 : i32, i32
  }
  func.func @transform_2(%arg0: i32, %arg1: i32, %arg2: i32) -> (i32, i32) {
    %c0_i32 = arith.constant 0 : i32
    %c0_i32_0 = arith.constant 0 : i32
    return %c0_i32, %arg1 : i32, i32
  }
  func.func @transform_3(%arg0: i32, %arg1: i32, %arg2: i32) -> (i32, i32) {
    %c0_i32 = arith.constant 0 : i32
    return %arg0, %arg1 : i32, i32
  }
}

</mosaic_0001>

<llo_original>
// kernel: nonlinear.1
$region0: #{nonlinear.1}
  #allocation0 [shape = 'u32[]', space=smem, size = 0x4, offset = 0x4, fixed_abs, tag = 'smem constant byte address 0x4 - core index']
  #allocation1 [shape = 'u32[144,128]{1,0:T(1,128)}', space=vmem, size = 0x12000, scoped, tag = 'internal scratch']
  %s0 = inlined_call_operand.vmem [shape: bf16[8,32], index: 0, kind: input, shape index: {}]
  %s1 = inlined_call_operand.vmem [shape: bf16[128,32], index: 1, kind: input, shape index: {}]
  %s2 = inlined_call_operand.vmem [shape: f32[1,128], index: 2, kind: input, shape index: {}]
  %s3 = inlined_call_operand.hbm [shape: f32[8,128], index: 3, kind: output, shape index: {}]
  %s4 = sld [smem:[#allocation0]]
  $region30: #{nonlinear.1} parent=0
    _
  %s6 = ssub.s32 1, %s4
  %s7 = scalar_select 0, %s6, %s4
  $region1: #{nonlinear.1} parent=0
    #allocation2 [shape = 'u8[4096]{0}', space=vmem, size = 0x1000, scoped, tag = 'output window, operand 0, single buffered']
    #allocation3 [shape = 's32[1]{0}', space=sflag, size = 0x4, scoped, tag = 'scoped memory for nonlinear.1']
    %8 = vsyncpa [#allocation3], 0
    // Predicated region
    $region2: #{nonlinear.1} parent=1 // pred_check
      _
    $region3: #{nonlinear.1} parent=1 // pred_check_branch
      %10 = sbr.rel (0) target = $region5
    $region4: #{nonlinear.1} parent=1 // pred_region
      _
    $region5: #{nonlinear.1} parent=1 // pred_fallthru
      _
    // Predicated region
    $region6: #{nonlinear.1} parent=1 // pred_check
      _
    $region7: #{nonlinear.1} parent=1 // pred_check_branch
      %12 = sbr.rel (0) target = $region9
    $region8: #{nonlinear.1} parent=1 // pred_region
      _
    $region9: #{nonlinear.1} parent=1 // pred_fallthru
      _
    // Predicated region
    $region10: #{nonlinear.1} parent=1 // pred_check
      _
    $region11: #{nonlinear.1} parent=1 // pred_check_branch
      %14 = sbr.rel (0) target = $region13
    $region12: #{nonlinear.1} parent=1 // pred_region
      _
    $region13: #{nonlinear.1} parent=1 // pred_fallthru
      _
    %p16 = scmp.eq.s32.totalorder 0, 0
    // Predicated region
    $region14: #{nonlinear.1} parent=1 // pred_check
      %p17 = pneg %p16
    $region15: #{nonlinear.1} parent=1 // pred_check_branch
      %19 = sbr.rel (%p17) target = $region17
    $region16: #{nonlinear.1} parent=1 // pred_region
      %20 = vst [vmem:[#allocation2] sm:$0xff] 0.0
    $region17: #{nonlinear.1} parent=1 // pred_fallthru
      _
    %v21 = vld [vmem:[#allocation2] sm:$0xff]
    %v22 = vld [vmem:[%s0] sm:$0xf]
    %v23 = vld [vmem:[%s1] sm:$0xf]
    %v24 = vld [vmem:[%s1 + $0x4] sm:$0xf]
    %v25 = vld [vmem:[%s1 + $0x8] sm:$0xf]
    %v26 = vld [vmem:[%s1 + $0xc] sm:$0xf]
    %v27 = vld [vmem:[%s1 + $0x10] sm:$0xf]
    %v28 = vld [vmem:[%s1 + $0x14] sm:$0xf]
    %v29 = vld [vmem:[%s1 + $0x18] sm:$0xf]
    %v30 = vld [vmem:[%s1 + $0x1c] sm:$0xf]
    %v31 = vld [vmem:[%s1 + $0x20] sm:$0xf]
    %v32 = vld [vmem:[%s1 + $0x24] sm:$0xf]
    %v33 = vld [vmem:[%s1 + $0x28] sm:$0xf]
    %v34 = vld [vmem:[%s1 + $0x2c] sm:$0xf]
    %v35 = vld [vmem:[%s1 + $0x30] sm:$0xf]
    %v36 = vld [vmem:[%s1 + $0x34] sm:$0xf]
    %v37 = vld [vmem:[%s1 + $0x38] sm:$0xf]
    %v38 = vld [vmem:[%s1 + $0x3c] sm:$0xf]
    %v55 = vunpack.c.l.b16 %v23
    %v56 = vunpack.c.l.b16 %v24
    %v57 = vunpack.c.l.b16 %v25
    %v58 = vunpack.c.l.b16 %v26
    %v59 = vunpack.c.l.b16 %v27
    %v60 = vunpack.c.l.b16 %v28
    %v61 = vunpack.c.l.b16 %v29
    %v62 = vunpack.c.l.b16 %v30
    %v63 = vunpack.c.l.b16 %v31
    %v64 = vunpack.c.l.b16 %v32
    %v65 = vunpack.c.l.b16 %v33
    %v66 = vunpack.c.l.b16 %v34
    %v67 = vunpack.c.l.b16 %v35
    %v68 = vunpack.c.l.b16 %v36
    %v69 = vunpack.c.l.b16 %v37
    %v70 = vunpack.c.l.b16 %v38
    %v71 = vpack.c.b16 %v56, %v55
    %v72 = vpack.c.b16 %v58, %v57
    %v73 = vpack.c.b16 %v60, %v59
    %v74 = vpack.c.b16 %v62, %v61
    %v75 = vpack.c.b16 %v64, %v63
    %v76 = vpack.c.b16 %v66, %v65
    %v77 = vpack.c.b16 %v68, %v67
    %v78 = vpack.c.b16 %v70, %v69
    %vm79 = vcmask 261120
    %v81 = vsel %vm79, %v22, 0
    %v84 = vsel %vm79, %v71, 0
    %v87 = vsel %vm79, %v72, 0
    %v90 = vsel %vm79, %v73, 0
    %v93 = vsel %vm79, %v74, 0
    %v96 = vsel %vm79, %v75, 0
    %v99 = vsel %vm79, %v76, 0
    %v102 = vsel %vm79, %v77, 0
    %v105 = vsel %vm79, %v78, 0
    %107 = vmatprep.subr.bf16.mxu0 0
    %108 = vmatpush1.bf16.xpose.msra.mxu0 %v105
    %109 = vmatprep.subr.bf16.mxu0 0
    %110 = vmatpush1.bf16.xpose.msra.mxu0 %v102
    %111 = vmatprep.subr.bf16.mxu0 0
    %112 = vmatpush1.bf16.xpose.msra.mxu0 %v99
    %113 = vmatprep.subr.bf16.mxu0 0
    %114 = vmatpush1.bf16.xpose.msra.mxu0 %v96
    %115 = vmatprep.subr.bf16.mxu0 0
    %116 = vmatpush1.bf16.xpose.msra.mxu0 %v93
    %117 = vmatprep.subr.bf16.mxu0 0
    %118 = vmatpush1.bf16.xpose.msra.mxu0 %v90
    %119 = vmatprep.subr.bf16.mxu0 0
    %120 = vmatpush1.bf16.xpose.msra.mxu0 %v87
    %121 = vmatprep.subr.bf16.mxu0 0
    %122 = vmatpush1.bf16.xpose.msra.mxu0 %v84
    %123 = vmatprep.subr.bf16.mxu0 0
    %124 = vmatpush2.bf16.xpose.msra.mxu0 0
    %125 = vmatprep.subr.bf16.mxu0 0
    %126 = vmatpush2.bf16.xpose.msra.mxu0 0
    %127 = vmatprep.subr.bf16.mxu0 0
    %128 = vmatpush2.bf16.xpose.msra.mxu0 0
    %129 = vmatprep.subr.bf16.mxu0 0
    %130 = vmatpush2.bf16.xpose.msra.mxu0 0
    %131 = vmatprep.subr.bf16.mxu0 0
    %132 = vmatpush2.bf16.xpose.msra.mxu0 0
    %133 = vmatprep.subr.bf16.mxu0 0
    %134 = vmatpush2.bf16.xpose.msra.mxu0 0
    %135 = vmatprep.subr.bf16.mxu0 0
    %136 = vmatpush2.bf16.xpose.msra.mxu0 0
    %137 = vmatprep.subr.bf16.mxu0 0
    %138 = vmatpush2.bf16.xpose.msra.mxu0 0
    %139 = vmatprep.mubr.bf16.mxu0 0
    %140 = vmatmul.mubr.bf16.gmra.mxu0 %v81
    %v141 = vpop.f32.mrf.mxu0
    %v142 = vadd.f32 0.0, %v141
    %v143 = vpop.f32.mrf.mxu0
    %v144 = vpop.f32.mrf.mxu0
    %v145 = vpop.f32.mrf.mxu0
    %146 = vdwg.mxu0
    %v147 = vadd.f32 %v21, %v142
    %148 = vst [vmem:[#allocation2] sm:$0xff] %v147
    // Predicated region
    $region18: #{nonlinear.1} parent=1 // pred_check
      %p149 = pneg %p16
    $region19: #{nonlinear.1} parent=1 // pred_check_branch
      %151 = sbr.rel (%p149) target = $region21
    $region20: #{nonlinear.1} parent=1 // pred_region
      %v152 = vld [vmem:[#allocation2] sm:$0xff]
      %v153 = vld [vmem:[%s2] sm:$0x1]
      %v155 = vlaneseq
      %v156 = vshrl.u32 %v155, 7
      %v157 = vsub.s32 0, %v156
      %v158 = vrot.slane %v153, %v157
      %v160 = vadd.f32 %v152, %v158
      %v161 = vmul.f32 %v160, %v160
      %v162 = vmul.f32 %v160, %v161
      %v163 = vmul.f32 %v162, 0.044715
      %v164 = vadd.f32 %v160, %v163
      %v165 = vmul.f32 %v164, 0.7978846
      %v166 = vtanh.pop %v165
      %v167 = vadd.f32 %v166, 1.0
      %v168 = vmul.f32 %v167, 0.5
      %v169 = vmul.f32 %v160, %v168
      %170 = vst [vmem:[#allocation2] sm:$0xff] %v169
    $region21: #{nonlinear.1} parent=1 // pred_fallthru
      _
    // Predicated region
    $region22: #{nonlinear.1} parent=1 // pred_check
      _
    $region23: #{nonlinear.1} parent=1 // pred_check_branch
      %172 = sbr.rel (0) target = $region25
    $region24: #{nonlinear.1} parent=1 // pred_region
      %s174 = ssub.s32 128, 128
      %175 = vsyncadd [#allocation3], %s174
      %s177 = sshll.u32 [#allocation2], 4
      %s178 = int_to_ptr.vmem [resolvable:$true] %s177
      %180 = dma.vmem_to_hbm [thread:$0]  %s178, 128, %s3, [#allocation3]
    $region25: #{nonlinear.1} parent=1 // pred_fallthru
      _
    // Predicated region
    $region26: #{nonlinear.1} parent=1 // pred_check
      _
    $region27: #{nonlinear.1} parent=1 // pred_check_branch
      %182 = sbr.rel (0) target = $region29
    $region28: #{nonlinear.1} parent=1 // pred_region
      %183 = dma.done [#allocation3], 128
    $region29: #{nonlinear.1} parent=1 // pred_fallthru
      _
    %184 = vsyncpa [#allocation3], 1

</llo_original>
